<compile_context>
chip_gen: v6e
topology: v6e:2x2x1
jax: 0.10.0
libtpu: 0.0.40
codegen_flags: <defaults>
</compile_context>

<pallas_src>
import functools

import jax
import jax.numpy as jnp
from jax import lax
from jax.experimental import pallas as pl
from jax.experimental.pallas import tpu as pltpu


_LANE = 128
_TARGET_BLOCK_BYTES = 4 * 1024 * 1024     # ~4 MiB input block per grid step
_MIN_SPLIT_BLOCK_BYTES = 1 * 1024 * 1024  # only add a 2nd row tile (megacore) if blocks stay >= 1 MiB


def _cdiv(a, b):
    return -(-a // b)


def _round_up(v, m):
    return ((v + m - 1) // m) * m


def _round_down(v, m):
    return (v // m) * m


def _sublane(dtype):
    # sublane alignment of the second-to-last block dim by element width
    return {4: 8, 2: 16, 1: 32}.get(jnp.dtype(dtype).itemsize, 8)


def _pow_elem(x, p):
    """x ** p with static float p (elementwise, on the big tiles)."""
    if float(p).is_integer() and 1 <= int(p) <= 8:
        n = int(p)
        r = x
        for _ in range(n - 1):
            r = r * x          # exact; matches torch for any sign of x
        return r
    # matches torch pow semantics (x>0 exact, x==0 -> 0 for p>0, x<0 -> NaN)
    return jnp.exp(jnp.log(x) * p)


def _root_elem(m, p):
    """m ** (1/p) with static float p (runs only on the tiny (TR, 1) epilogue tile)."""
    if p == 1.0:
        return m
    if p == 2.0:
        return jnp.sqrt(m)
    if p == 4.0:
        return jnp.sqrt(jnp.sqrt(m))
    return jnp.exp(jnp.log(m) * (1.0 / p))


def _gem_kernel_single(x_ref, o_ref, *, p, inv_hw):
    """Whole H*W row fits in one block: pow -> lane-reduce -> root, no scratch needed."""
    xp = _pow_elem(x_ref[...].astype(jnp.float32), p)     # in-kernel dtype cast
    s = jnp.sum(xp, axis=1, keepdims=True)                 # one lane-reduce per row block
    o_ref[...] = _root_elem(s * inv_hw + 1e-12, p).astype(o_ref.dtype)


def _gem_kernel_tiled(x_ref, o_ref, acc_ref, *, p, inv_hw, L, TC):
    """Large H*W: lane-aligned column tiles accumulated into a (TR, 128) scratch."""
    j = pl.program_id(1)

    @pl.when(j == 0)
    def _init():
        acc_ref[...] = jnp.zeros_like(acc_ref)

    xp = _pow_elem(x_ref[...].astype(jnp.float32), p)      # in-kernel dtype cast

    if L % TC != 0:
        # Mask the ragged H*W tail (no wrapper-side jnp.pad). All-true on non-last blocks.
        col = j * TC + lax.broadcasted_iota(jnp.int32, xp.shape, 1)
        xp = jnp.where(col < L, xp, 0.0)

    # Fold the block's lane-tile slices with plain vector adds (pure VALU, no XLU):
    part = xp[:, 0:_LANE]
    for k in range(1, TC // _LANE):
        part = part + xp[:, k * _LANE:(k + 1) * _LANE]
    acc_ref[...] += part

    @pl.when(j == pl.num_programs(1) - 1)
    def _finalize():
        s = jnp.sum(acc_ref[...], axis=1, keepdims=True)    # one XLU lane-reduce per row tile
        o_ref[...] = _root_elem(s * inv_hw + 1e-12, p).astype(o_ref.dtype)


def gem_pool(x, p=3.0, output_size=1, *, col_tile=None):
    """GeneralizedMeanPoolingBase.forward for output_size == 1 (global GeM pooling).

    `col_tile` (testing knob): force the column-tiled path with the given H*W tile.
    """
    if output_size not in (1, (1, 1)):
        # TODO(synk): windowed adaptive GeM (output_size != 1) is not implemented in Pallas.
        raise NotImplementedError("only output_size=1 (global GeM pooling) is implemented")
    p = float(p)
    assert p > 0

    N, C, H, W = x.shape
    R, L = N * C, H * W
    x2 = x.reshape(R, L)                       # free view of contiguous NCHW; NO dtype cast here

    itemsize = jnp.dtype(x.dtype).itemsize
    sub = _sublane(x.dtype)
    inv_hw = 1.0 / L
    row_bytes = L * itemsize

    single_block_cols = (col_tile is None) and (row_bytes * sub <= _TARGET_BLOCK_BYTES)

    if single_block_cols:
        # ---- Regime A (typical GeM inputs: L = 49 / 196 / 256 / ...): one column block. ----
        TR = max(sub, _round_down(_TARGET_BLOCK_BYTES // row_bytes, sub))
        TR = min(TR, _round_up(R, sub))
        # Megacore (v7x) split: only if it keeps each block comfortably large, so v5e/v6e
        # never pay extra grid-step overhead.
        if _cdiv(R, TR) < 2:
            tr_half = _round_up(_cdiv(R, 2), sub)
            if sub <= tr_half < TR and tr_half * row_bytes >= _MIN_SPLIT_BLOCK_BYTES:
                TR = tr_half

        out = pl.pallas_call(
            functools.partial(_gem_kernel_single, p=p, inv_hw=inv_hw),
            out_shape=jax.ShapeDtypeStruct((R, 1), x.dtype),
            grid=(_cdiv(R, TR),),
            in_specs=[pl.BlockSpec((TR, L), lambda i: (i, 0))],
            out_specs=pl.BlockSpec((TR, 1), lambda i: (i, 0)),
            compiler_params=pltpu.CompilerParams(
                dimension_semantics=("parallel",)),
        )(x2)
    else:
        # ---- Regime B (very large H*W): lane-aligned column tiles + (TR, 128) accumulator. ----
        if col_tile is not None:
            TC = _round_up(int(col_tile), _LANE)
        else:
            TC = 2048
        TC = min(TC, _round_up(L, _LANE))
        TR = max(sub, _round_down(_TARGET_BLOCK_BYTES // (TC * itemsize), sub))
        TR = min(TR, _round_up(R, sub))

        out = pl.pallas_call(
            functools.partial(_gem_kernel_tiled, p=p, inv_hw=inv_hw, L=L, TC=TC),
            out_shape=jax.ShapeDtypeStruct((R, 1), x.dtype),
            grid=(_cdiv(R, TR), _cdiv(L, TC)),
            in_specs=[pl.BlockSpec((TR, TC), lambda i, j: (i, j))],
            out_specs=pl.BlockSpec((TR, 1), lambda i, j: (i, 0)),
            scratch_shapes=[pltpu.VMEM((TR, _LANE), jnp.float32)],
            compiler_params=pltpu.CompilerParams(
                dimension_semantics=("parallel", "arbitrary")),
        )(x2)

    return out.reshape(N, C, 1, 1)


class GeneralizedMeanPoolingBase:
    """JAX/Pallas port of the PyTorch module (eval-mode forward)."""

    def __init__(self, norm=3, output_size=1, eps=1e-6):
        assert norm > 0
        self.p = float(norm)
        self.output_size = output_size
        self.eps = eps   # unused by the Base forward (no clamp), kept for parity

    def __call__(self, x):
        return gem_pool(x, p=self.p, output_size=self.output_size)


# ----------------------------------------------------------------------------
if __name__ == "__main__":
    key = jax.random.PRNGKey(0)
    k1, k2, k3, k4 = jax.random.split(key, 4)

    # Case 1: module defaults (p=3), post-ReLU-like non-negative features, aligned dims.
    x1 = jax.random.uniform(k1, (2, 64, 16, 16), jnp.float32, minval=0.0, maxval=2.0)
    gem3 = GeneralizedMeanPoolingBase(norm=3, output_size=1)
    out1 = gem3(x1)
    jax.block_until_ready(out1)
    assert out1.shape == (2, 64, 1, 1), out1.shape
    assert bool(jnp.all(jnp.isfinite(out1)))
    ref1 = (jnp.mean(x1 ** 3.0, axis=(2, 3), keepdims=True) + 1e-12) ** (1.0 / 3.0)
    assert bool(jnp.allclose(out1, ref1, rtol=1e-5, atol=1e-5)), \
        float(jnp.max(jnp.abs(out1 - ref1)))

    # Case 2: p=2, signed inputs, non-(8,128)-aligned spatial dims (ragged L, no padding pass).
    x2 = jax.random.normal(k2, (2, 4, 15, 9), jnp.float32)
    gem2 = GeneralizedMeanPoolingBase(norm=2, output_size=1)
    out2 = gem2(x2)
    jax.block_until_ready(out2)
    assert out2.shape == (2, 4, 1, 1), out2.shape
    assert bool(jnp.all(jnp.isfinite(out2)))
    ref2 = (jnp.mean(x2 ** 2.0, axis=(2, 3), keepdims=True) + 1e-12) ** 0.5
    assert bool(jnp.allclose(out2, ref2, rtol=1e-5, atol=1e-5)), \
        float(jnp.max(jnp.abs(out2 - ref2)))

    # Case 3: bf16 input streamed in native dtype (in-kernel f32 cast, sublane=16 blocks).
    x3 = jax.random.uniform(k3, (2, 8, 14, 14), jnp.float32,
                            minval=0.0, maxval=2.0).astype(jnp.bfloat16)
    out3 = gem3(x3)
    jax.block_until_ready(out3)
    assert out3.shape == (2, 8, 1, 1), out3.shape
    assert out3.dtype == jnp.bfloat16, out3.dtype
    ref3 = (jnp.mean(x3.astype(jnp.float32) ** 3.0, axis=(2, 3), keepdims=True)
            + 1e-12) ** (1.0 / 3.0)
    assert bool(jnp.allclose(out3.astype(jnp.float32), ref3, rtol=2e-2, atol=2e-2)), \
        float(jnp.max(jnp.abs(out3.astype(jnp.float32) - ref3)))

    # Case 4: force the column-tiled (large-H*W) path: ragged last column block exercises the
    # in-kernel iota mask and the (TR, 128) lane-tile-folded accumulator.
    x4 = jax.random.uniform(k4, (1, 16, 24, 24), jnp.float32, minval=0.0, maxval=2.0)
    out4 = gem_pool(x4, p=3.0, output_size=1, col_tile=256)
    jax.block_until_ready(out4)
    assert out4.shape == (1, 16, 1, 1), out4.shape
    assert bool(jnp.all(jnp.isfinite(out4)))
    ref4 = (jnp.mean(x4 ** 3.0, axis=(2, 3), keepdims=True) + 1e-12) ** (1.0 / 3.0)
    assert bool(jnp.allclose(out4, ref4, rtol=1e-5, atol=1e-5)), \
        float(jnp.max(jnp.abs(out4 - ref4)))

    print("KERNEL_OK")
</pallas_src>

<mosaic_0001>
module attributes {stable_mosaic.version = 11 : i64} {
  func.func @_gem_kernel_single(%arg0: i32, %arg1: memref<128x256xf32, #tpu.memory_space<vmem>>, %arg2: memref<128x1xf32, #tpu.memory_space<vmem>>) attributes {dimension_semantics = [#tpu.dimension_semantics<parallel>], iteration_bounds = array<i64: 1>, scalar_prefetch = 0 : i64, scratch_operands = 0 : i64, tpu.core_type = #tpu.core_type<tc>, window_params = [{transform_indices = @transform_0, window_bounds = array<i64: 128, 256>}, {transform_indices = @transform_1, window_bounds = array<i64: 128, 1>}]} {
    %c0 = arith.constant 0 : index
    %c0_0 = arith.constant 0 : index
    %0 = vector.load %arg1[%c0, %c0_0] : memref<128x256xf32, #tpu.memory_space<vmem>>, vector<128x256xf32>
    %1 = arith.mulf %0, %0 : vector<128x256xf32>
    %2 = arith.mulf %1, %0 : vector<128x256xf32>
    %cst = arith.constant dense<0.000000e+00> : vector<128xf32>
    %3 = vector.multi_reduction <add>, %2, %cst [1] : vector<128x256xf32> to vector<128xf32>
    %4 = vector.shape_cast %3 : vector<128xf32> to vector<128x1xf32>
    %cst_1 = arith.constant 3.906250e-03 : f32
    %5 = vector.broadcast %cst_1 : f32 to vector<128x1xf32>
    %6 = arith.mulf %4, %5 : vector<128x1xf32>
    %cst_2 = arith.constant 9.99999996E-13 : f32
    %7 = vector.broadcast %cst_2 : f32 to vector<128x1xf32>
    %8 = arith.addf %6, %7 : vector<128x1xf32>
    %9 = math.log %8 : vector<128x1xf32>
    %cst_3 = arith.constant 0.333333343 : f32
    %10 = vector.broadcast %cst_3 : f32 to vector<128x1xf32>
    %11 = arith.mulf %9, %10 : vector<128x1xf32>
    %12 = math.exp %11 : vector<128x1xf32>
    %c0_4 = arith.constant 0 : index
    %c0_5 = arith.constant 0 : index
    %13 = vector.load %arg2[%c0_4, %c0_5] : memref<128x1xf32, #tpu.memory_space<vmem>>, vector<128x1xf32>
    tpu.vector_store %arg2[%c0_4, %c0_5], %12 {strides = array<i32>} : memref<128x1xf32, #tpu.memory_space<vmem>>, vector<128x1xf32>,
    return
  }
  func.func @transform_0(%arg0: i32) -> (i32, i32) {
    %c0_i32 = arith.constant 0 : i32
    %c0_i32_0 = arith.constant 0 : i32
    return %arg0, %c0_i32 : i32, i32
  }
  func.func @transform_1(%arg0: i32) -> (i32, i32) {
    %c0_i32 = arith.constant 0 : i32
    %c0_i32_0 = arith.constant 0 : i32
    return %arg0, %c0_i32 : i32, i32
  }
}

</mosaic_0001>

<llo_original>
// kernel: tpu_custom_call.1
$region0: #{tpu_custom_call.1}
  #allocation0 [shape = 'u32[]', space=smem, size = 0x4, offset = 0x4, fixed_abs, tag = 'smem constant byte address 0x4 - core index']
  #allocation1 [shape = 'u32[144,128]{1,0:T(1,128)}', space=vmem, size = 0x12000, scoped, tag = 'internal scratch']
  %s0 = inlined_call_operand.hbm [shape: f32[128,256], index: 0, kind: input, shape index: {}]
  %s1 = inlined_call_operand.vmem [shape: f32[128,1], index: 1, kind: output, shape index: {}]
  %s2 = sld [smem:[#allocation0]]
  $region18: #{tpu_custom_call.1} parent=0
    _
  %s4 = ssub.s32 1, %s2
  %s5 = scalar_select 0, %s4, %s2
  $region1: #{tpu_custom_call.1} parent=0
    #allocation2 [shape = 'u8[131072]{0}', space=vmem, size = 0x20000, scoped, tag = 'input window, operand 0, single buffered']
    #allocation3 [shape = 's32[1]{0}', space=sflag, size = 0x4, scoped, tag = 'scoped memory for tpu_custom_call.1']
    %6 = vsyncpa [#allocation3], 0
    // Predicated region
    $region2: #{tpu_custom_call.1} parent=1 // pred_check
      _
    $region3: #{tpu_custom_call.1} parent=1 // pred_check_branch
      %8 = sbr.rel (0) target = $region5
    $region4: #{tpu_custom_call.1} parent=1 // pred_region
      %s10 = ssub.s32 4096, 4096
      %11 = vsyncadd [#allocation3], %s10
      %s12 = sshll.u32 [#allocation2], 4
      %s13 = int_to_ptr.vmem [resolvable:$true] %s12
      %18 = dma.hbm_to_vmem [thread:$0]  %s0, 4096, %s13, [#allocation3], 256, 256, 16
    $region5: #{tpu_custom_call.1} parent=1 // pred_fallthru
      _
    // Predicated region
    $region6: #{tpu_custom_call.1} parent=1 // pred_check
      _
    $region7: #{tpu_custom_call.1} parent=1 // pred_check_branch
      %20 = sbr.rel (0) target = $region9
    $region8: #{tpu_custom_call.1} parent=1 // pred_region
      %21 = dma.done [#allocation3], 4096
    $region9: #{tpu_custom_call.1} parent=1 // pred_fallthru
      _
    %v22 = vld [vmem:[#allocation2] sm:$0xff]
    %v23 = vld [vmem:[#allocation2 + $0x8] sm:$0xff]
    %v24 = vld [vmem:[#allocation2 + $0x10] sm:$0xff]
    %v25 = vld [vmem:[#allocation2 + $0x18] sm:$0xff]
    %v26 = vld [vmem:[#allocation2 + $0x20] sm:$0xff]
    %v27 = vld [vmem:[#allocation2 + $0x28] sm:$0xff]
    %v28 = vld [vmem:[#allocation2 + $0x30] sm:$0xff]
    %v29 = vld [vmem:[#allocation2 + $0x38] sm:$0xff]
    %v30 = vld [vmem:[#allocation2 + $0x40] sm:$0xff]
    %v31 = vld [vmem:[#allocation2 + $0x48] sm:$0xff]
    %v32 = vld [vmem:[#allocation2 + $0x50] sm:$0xff]
    %v33 = vld [vmem:[#allocation2 + $0x58] sm:$0xff]
    %v34 = vld [vmem:[#allocation2 + $0x60] sm:$0xff]
    %v35 = vld [vmem:[#allocation2 + $0x68] sm:$0xff]
    %v36 = vld [vmem:[#allocation2 + $0x70] sm:$0xff]
    %v37 = vld [vmem:[#allocation2 + $0x78] sm:$0xff]
    %v38 = vld [vmem:[#allocation2 + $0x80] sm:$0xff]
    %v39 = vld [vmem:[#allocation2 + $0x88] sm:$0xff]
    %v40 = vld [vmem:[#allocation2 + $0x90] sm:$0xff]
    %v41 = vld [vmem:[#allocation2 + $0x98] sm:$0xff]
    %v42 = vld [vmem:[#allocation2 + $0xa0] sm:$0xff]
    %v43 = vld [vmem:[#allocation2 + $0xa8] sm:$0xff]
    %v44 = vld [vmem:[#allocation2 + $0xb0] sm:$0xff]
    %v45 = vld [vmem:[#allocation2 + $0xb8] sm:$0xff]
    %v46 = vld [vmem:[#allocation2 + $0xc0] sm:$0xff]
    %v47 = vld [vmem:[#allocation2 + $0xc8] sm:$0xff]
    %v48 = vld [vmem:[#allocation2 + $0xd0] sm:$0xff]
    %v49 = vld [vmem:[#allocation2 + $0xd8] sm:$0xff]
    %v50 = vld [vmem:[#allocation2 + $0xe0] sm:$0xff]
    %v51 = vld [vmem:[#allocation2 + $0xe8] sm:$0xff]
    %v52 = vld [vmem:[#allocation2 + $0xf0] sm:$0xff]
    %v53 = vld [vmem:[#allocation2 + $0xf8] sm:$0xff]
    %v54 = vmul.f32 %v22, %v22
    %v55 = vmul.f32 %v23, %v23
    %v56 = vmul.f32 %v24, %v24
    %v57 = vmul.f32 %v25, %v25
    %v58 = vmul.f32 %v26, %v26
    %v59 = vmul.f32 %v27, %v27
    %v60 = vmul.f32 %v28, %v28
    %v61 = vmul.f32 %v29, %v29
    %v62 = vmul.f32 %v30, %v30
    %v63 = vmul.f32 %v31, %v31
    %v64 = vmul.f32 %v32, %v32
    %v65 = vmul.f32 %v33, %v33
    %v66 = vmul.f32 %v34, %v34
    %v67 = vmul.f32 %v35, %v35
    %v68 = vmul.f32 %v36, %v36
    %v69 = vmul.f32 %v37, %v37
    %v70 = vmul.f32 %v38, %v38
    %v71 = vmul.f32 %v39, %v39
    %v72 = vmul.f32 %v40, %v40
    %v73 = vmul.f32 %v41, %v41
    %v74 = vmul.f32 %v42, %v42
    %v75 = vmul.f32 %v43, %v43
    %v76 = vmul.f32 %v44, %v44
    %v77 = vmul.f32 %v45, %v45
    %v78 = vmul.f32 %v46, %v46
    %v79 = vmul.f32 %v47, %v47
    %v80 = vmul.f32 %v48, %v48
    %v81 = vmul.f32 %v49, %v49
    %v82 = vmul.f32 %v50, %v50
    %v83 = vmul.f32 %v51, %v51
    %v84 = vmul.f32 %v52, %v52
    %v85 = vmul.f32 %v53, %v53
    %v86 = vmul.f32 %v54, %v22
    %v87 = vmul.f32 %v55, %v23
    %v88 = vmul.f32 %v56, %v24
    %v89 = vmul.f32 %v57, %v25
    %v90 = vmul.f32 %v58, %v26
    %v91 = vmul.f32 %v59, %v27
    %v92 = vmul.f32 %v60, %v28
    %v93 = vmul.f32 %v61, %v29
    %v94 = vmul.f32 %v62, %v30
    %v95 = vmul.f32 %v63, %v31
    %v96 = vmul.f32 %v64, %v32
    %v97 = vmul.f32 %v65, %v33
    %v98 = vmul.f32 %v66, %v34
    %v99 = vmul.f32 %v67, %v35
    %v100 = vmul.f32 %v68, %v36
    %v101 = vmul.f32 %v69, %v37
    %v102 = vmul.f32 %v70, %v38
    %v103 = vmul.f32 %v71, %v39
    %v104 = vmul.f32 %v72, %v40
    %v105 = vmul.f32 %v73, %v41
    %v106 = vmul.f32 %v74, %v42
    %v107 = vmul.f32 %v75, %v43
    %v108 = vmul.f32 %v76, %v44
    %v109 = vmul.f32 %v77, %v45
    %v110 = vmul.f32 %v78, %v46
    %v111 = vmul.f32 %v79, %v47
    %v112 = vmul.f32 %v80, %v48
    %v113 = vmul.f32 %v81, %v49
    %v114 = vmul.f32 %v82, %v50
    %v115 = vmul.f32 %v83, %v51
    %v116 = vmul.f32 %v84, %v52
    %v117 = vmul.f32 %v85, %v53
    %v118 = vadd.f32 %v86, %v87
    %119 = vadd.xlane.f32.xlu0 %v118
    %v120 = vpop.xlane.xlu0 %119
    %v121 = vadd.f32 %v88, %v89
    %122 = vadd.xlane.f32.xlu0 %v121
    %v123 = vpop.xlane.xlu0 %122
    %v124 = vadd.f32 %v90, %v91
    %125 = vadd.xlane.f32.xlu0 %v124
    %v126 = vpop.xlane.xlu0 %125
    %v127 = vadd.f32 %v92, %v93
    %128 = vadd.xlane.f32.xlu0 %v127
    %v129 = vpop.xlane.xlu0 %128
    %v130 = vadd.f32 %v94, %v95
    %131 = vadd.xlane.f32.xlu0 %v130
    %v132 = vpop.xlane.xlu0 %131
    %v133 = vadd.f32 %v96, %v97
    %134 = vadd.xlane.f32.xlu0 %v133
    %v135 = vpop.xlane.xlu0 %134
    %v136 = vadd.f32 %v98, %v99
    %137 = vadd.xlane.f32.xlu0 %v136
    %v138 = vpop.xlane.xlu0 %137
    %v139 = vadd.f32 %v100, %v101
    %140 = vadd.xlane.f32.xlu0 %v139
    %v141 = vpop.xlane.xlu0 %140
    %v142 = vadd.f32 %v102, %v103
    %143 = vadd.xlane.f32.xlu0 %v142
    %v144 = vpop.xlane.xlu0 %143
    %v145 = vadd.f32 %v104, %v105
    %146 = vadd.xlane.f32.xlu0 %v145
    %v147 = vpop.xlane.xlu0 %146
    %v148 = vadd.f32 %v106, %v107
    %149 = vadd.xlane.f32.xlu0 %v148
    %v150 = vpop.xlane.xlu0 %149
    %v151 = vadd.f32 %v108, %v109
    %152 = vadd.xlane.f32.xlu0 %v151
    %v153 = vpop.xlane.xlu0 %152
    %v154 = vadd.f32 %v110, %v111
    %155 = vadd.xlane.f32.xlu0 %v154
    %v156 = vpop.xlane.xlu0 %155
    %v157 = vadd.f32 %v112, %v113
    %158 = vadd.xlane.f32.xlu0 %v157
    %v159 = vpop.xlane.xlu0 %158
    %v160 = vadd.f32 %v114, %v115
    %161 = vadd.xlane.f32.xlu0 %v160
    %v162 = vpop.xlane.xlu0 %161
    %v163 = vadd.f32 %v116, %v117
    %164 = vadd.xlane.f32.xlu0 %v163
    %v165 = vpop.xlane.xlu0 %164
    %v166 = vmul.f32 %v120, 0.00390625
    %v167 = vmul.f32 %v123, 0.00390625
    %v168 = vmul.f32 %v126, 0.00390625
    %v169 = vmul.f32 %v129, 0.00390625
    %v170 = vmul.f32 %v132, 0.00390625
    %v171 = vmul.f32 %v135, 0.00390625
    %v172 = vmul.f32 %v138, 0.00390625
    %v173 = vmul.f32 %v141, 0.00390625
    %v174 = vmul.f32 %v144, 0.00390625
    %v175 = vmul.f32 %v147, 0.00390625
    %v176 = vmul.f32 %v150, 0.00390625
    %v177 = vmul.f32 %v153, 0.00390625
    %v178 = vmul.f32 %v156, 0.00390625
    %v179 = vmul.f32 %v159, 0.00390625
    %v180 = vmul.f32 %v162, 0.00390625
    %v181 = vmul.f32 %v165, 0.00390625
    %v182 = vadd.f32 %v166, 1e-12
    %v183 = vadd.f32 %v167, 1e-12
    %v184 = vadd.f32 %v168, 1e-12
    %v185 = vadd.f32 %v169, 1e-12
    %v186 = vadd.f32 %v170, 1e-12
    %v187 = vadd.f32 %v171, 1e-12
    %v188 = vadd.f32 %v172, 1e-12
    %v189 = vadd.f32 %v173, 1e-12
    %v190 = vadd.f32 %v174, 1e-12
    %v191 = vadd.f32 %v175, 1e-12
    %v192 = vadd.f32 %v176, 1e-12
    %v193 = vadd.f32 %v177, 1e-12
    %v194 = vadd.f32 %v178, 1e-12
    %v195 = vadd.f32 %v179, 1e-12
    %v196 = vadd.f32 %v180, 1e-12
    %v197 = vadd.f32 %v181, 1e-12
    %v198 = vlog2.pop %v182
    %v199 = vmul.f32 %v198, 0.6931472
    %v200 = vlog2.pop %v183
    %v201 = vmul.f32 %v200, 0.6931472
    %v202 = vlog2.pop %v184
    %v203 = vmul.f32 %v202, 0.6931472
    %v204 = vlog2.pop %v185
    %v205 = vmul.f32 %v204, 0.6931472
    %v206 = vlog2.pop %v186
    %v207 = vmul.f32 %v206, 0.6931472
    %v208 = vlog2.pop %v187
    %v209 = vmul.f32 %v208, 0.6931472
    %v210 = vlog2.pop %v188
    %v211 = vmul.f32 %v210, 0.6931472
    %v212 = vlog2.pop %v189
    %v213 = vmul.f32 %v212, 0.6931472
    %v214 = vlog2.pop %v190
    %v215 = vmul.f32 %v214, 0.6931472
    %v216 = vlog2.pop %v191
    %v217 = vmul.f32 %v216, 0.6931472
    %v218 = vlog2.pop %v192
    %v219 = vmul.f32 %v218, 0.6931472
    %v220 = vlog2.pop %v193
    %v221 = vmul.f32 %v220, 0.6931472
    %v222 = vlog2.pop %v194
    %v223 = vmul.f32 %v222, 0.6931472
    %v224 = vlog2.pop %v195
    %v225 = vmul.f32 %v224, 0.6931472
    %v226 = vlog2.pop %v196
    %v227 = vmul.f32 %v226, 0.6931472
    %v228 = vlog2.pop %v197
    %v229 = vmul.f32 %v228, 0.6931472
    %v230 = vmul.f32 %v199, 0.33333334
    %v231 = vmul.f32 %v201, 0.33333334
    %v232 = vmul.f32 %v203, 0.33333334
    %v233 = vmul.f32 %v205, 0.33333334
    %v234 = vmul.f32 %v207, 0.33333334
    %v235 = vmul.f32 %v209, 0.33333334
    %v236 = vmul.f32 %v211, 0.33333334
    %v237 = vmul.f32 %v213, 0.33333334
    %v238 = vmul.f32 %v215, 0.33333334
    %v239 = vmul.f32 %v217, 0.33333334
    %v240 = vmul.f32 %v219, 0.33333334
    %v241 = vmul.f32 %v221, 0.33333334
    %v242 = vmul.f32 %v223, 0.33333334
    %v243 = vmul.f32 %v225, 0.33333334
    %v244 = vmul.f32 %v227, 0.33333334
    %v245 = vmul.f32 %v229, 0.33333334
    %v246 = vmul.f32 %v230, 1.442695
    %v247 = vpow.pop %v246
    %v248 = vmul.f32 %v231, 1.442695
    %v249 = vpow.pop %v248
    %v250 = vmul.f32 %v232, 1.442695
    %v251 = vpow.pop %v250
    %v252 = vmul.f32 %v233, 1.442695
    %v253 = vpow.pop %v252
    %v254 = vmul.f32 %v234, 1.442695
    %v255 = vpow.pop %v254
    %v256 = vmul.f32 %v235, 1.442695
    %v257 = vpow.pop %v256
    %v258 = vmul.f32 %v236, 1.442695
    %v259 = vpow.pop %v258
    %v260 = vmul.f32 %v237, 1.442695
    %v261 = vpow.pop %v260
    %v262 = vmul.f32 %v238, 1.442695
    %v263 = vpow.pop %v262
    %v264 = vmul.f32 %v239, 1.442695
    %v265 = vpow.pop %v264
    %v266 = vmul.f32 %v240, 1.442695
    %v267 = vpow.pop %v266
    %v268 = vmul.f32 %v241, 1.442695
    %v269 = vpow.pop %v268
    %v270 = vmul.f32 %v242, 1.442695
    %v271 = vpow.pop %v270
    %v272 = vmul.f32 %v243, 1.442695
    %v273 = vpow.pop %v272
    %v274 = vmul.f32 %v244, 1.442695
    %v275 = vpow.pop %v274
    %v276 = vmul.f32 %v245, 1.442695
    %v277 = vpow.pop %v276
    %vm278 = vcmask 7168
    %279 = vst.msk [vmem:[%s1] sm:$0xff] %vm278, %v247
    %280 = vst.msk [vmem:[%s1 + $0x8] sm:$0xff] %vm278, %v249
    %281 = vst.msk [vmem:[%s1 + $0x10] sm:$0xff] %vm278, %v251
    %282 = vst.msk [vmem:[%s1 + $0x18] sm:$0xff] %vm278, %v253
    %283 = vst.msk [vmem:[%s1 + $0x20] sm:$0xff] %vm278, %v255
    %284 = vst.msk [vmem:[%s1 + $0x28] sm:$0xff] %vm278, %v257
    %285 = vst.msk [vmem:[%s1 + $0x30] sm:$0xff] %vm278, %v259
    %286 = vst.msk [vmem:[%s1 + $0x38] sm:$0xff] %vm278, %v261
    %287 = vst.msk [vmem:[%s1 + $0x40] sm:$0xff] %vm278, %v263
    %288 = vst.msk [vmem:[%s1 + $0x48] sm:$0xff] %vm278, %v265
    %289 = vst.msk [vmem:[%s1 + $0x50] sm:$0xff] %vm278, %v267
    %290 = vst.msk [vmem:[%s1 + $0x58] sm:$0xff] %vm278, %v269
    %291 = vst.msk [vmem:[%s1 + $0x60] sm:$0xff] %vm278, %v271
    %292 = vst.msk [vmem:[%s1 + $0x68] sm:$0xff] %vm278, %v273
    %293 = vst.msk [vmem:[%s1 + $0x70] sm:$0xff] %vm278, %v275
    %294 = vst.msk [vmem:[%s1 + $0x78] sm:$0xff] %vm278, %v277
    // Predicated region
    $region10: #{tpu_custom_call.1} parent=1 // pred_check
      _
    $region11: #{tpu_custom_call.1} parent=1 // pred_check_branch
      %296 = sbr.rel (0) target = $region13
    $region12: #{tpu_custom_call.1} parent=1 // pred_region
      _
    $region13: #{tpu_custom_call.1} parent=1 // pred_fallthru
      _
    // Predicated region
    $region14: #{tpu_custom_call.1} parent=1 // pred_check
      _
    $region15: #{tpu_custom_call.1} parent=1 // pred_check_branch
      %298 = sbr.rel (0) target = $region17
    $region16: #{tpu_custom_call.1} parent=1 // pred_region
      _
    $region17: #{tpu_custom_call.1} parent=1 // pred_fallthru
      _
    %299 = vsyncpa [#allocation3], 1

</llo_original>
